<compile_context>
chip_gen: v7x
topology: tpu7x:2x2x1
jax: 0.10.0
libtpu: 0.0.40
codegen_flags: <defaults>
</compile_context>

<pallas_src>
import functools

import jax
import jax.numpy as jnp
from jax.experimental import pallas as pl
from jax.experimental.pallas import tpu as pltpu


def _fused_gcn_kernel(x_ref, w_ref, b_ref, o_ref, *, negative_slope):
    # x_ref: (Bt, ch, D)   this tile of graphs' node features
    # w_ref: (L, D, H)     stacked GCN linear weights (resident across grid)
    # b_ref: (L, 1, H)     stacked GCN biases         (resident across grid)
    # o_ref: (Bt, ch, H)   broadcast node outputs of the final layer
    ch = x_ref.shape[1]
    num_layers = w_ref.shape[0]

    # Algebraic hoist: reduce over nodes before the matmul (XLU sublane reduce).
    s = jnp.sum(x_ref[...], axis=1) * (1.0 / ch)                      # (Bt, D)

    # All layers fused; L is a compile-time constant so this is a static unroll.
    for l in range(num_layers):
        s = jnp.dot(s, w_ref[l], preferred_element_type=jnp.float32)  # (Bt, H) on MXU
        s = s + b_ref[l]                                              # bias on reduced rows
        s = jnp.where(s > 0, s, negative_slope * s)                   # LeakyReLU (f32 VPU)

    # Every node of a graph shares the same feature vector -> broadcast only at the
    # final store (lane-dense, identical sublanes).
    o_ref[...] = jnp.broadcast_to(s[:, None, :], o_ref.shape).astype(o_ref.dtype)


def mpnn_conv_forward(embeddings, b, ch, conv_weights, conv_biases,
                      negative_slope=0.01):
    """embeddings: (b*ch, embedding_dim) -> (b*ch, hidden_dim). Fused GCN stack."""
    D = embeddings.shape[-1]
    L = len(conv_weights)
    H = conv_weights[-1].shape[1]

    x = embeddings.reshape(b, ch, D).astype(jnp.float32)
    # Stack layer params; all layers share (D, H) shape (as in the PyTorch module,
    # which requires D == H for num_layers > 1 anyway).
    ws = jnp.stack([w.astype(jnp.float32) for w in conv_weights])                 # (L, D, H)
    bs = jnp.stack([bb.reshape(1, H).astype(jnp.float32) for bb in conv_biases])  # (L, 1, H)

    # Tile graphs along M; 128 rows already saturates the MXU on v5e and is a
    # comfortable tile on v6e/v7x.  With tiny b the whole batch is one step.
    tile_b = min(b, 128)
    n_tiles = pl.cdiv(b, tile_b)

    kernel = functools.partial(_fused_gcn_kernel, negative_slope=negative_slope)
    out = pl.pallas_call(
        kernel,
        out_shape=jax.ShapeDtypeStruct((b, ch, H), jnp.float32),
        grid_spec=pltpu.PrefetchScalarGridSpec(
            num_scalar_prefetch=0,
            grid=(n_tiles,),
            in_specs=[
                pl.BlockSpec((tile_b, ch, D), lambda i: (i, 0, 0)),  # node features tile
                pl.BlockSpec((L, D, H), lambda i: (0, 0, 0)),        # weights (DMA'd once)
                pl.BlockSpec((L, 1, H), lambda i: (0, 0, 0)),        # biases  (DMA'd once)
            ],
            out_specs=pl.BlockSpec((tile_b, ch, H), lambda i: (i, 0, 0)),
        ),
        compiler_params=pltpu.CompilerParams(
            dimension_semantics=("parallel",),   # shard graph tiles across cores (v7x)
        ),
    )(x, ws, bs)
    return out.reshape(b * ch, H)


def _reference_forward(embeddings, b, ch, conv_weights, conv_biases,
                       negative_slope=0.01):
    """Pure-JAX reference using the original per-node (matmul-then-aggregate) math."""
    D = embeddings.shape[-1]
    x = embeddings.reshape(b, ch, D)
    for w, bias in zip(conv_weights, conv_biases):
        y = jnp.einsum("bnd,dh->bnh", x, w)
        s = jnp.sum(y, axis=1, keepdims=True) / ch + bias[None, None, :]
        s = jnp.broadcast_to(s, (b, ch, w.shape[1]))
        x = jnp.where(s > 0, s, negative_slope * s)
    return x.reshape(b * ch, -1)


if __name__ == "__main__":
    # Small, deterministic setup consistent with the module defaults.
    embedding_dim = 128
    hidden_dim = 128
    num_layers = 1
    b, ch = 2, 8            # b*ch = 16 nodes

    key = jax.random.PRNGKey(0)
    k_x, k_w, k_b, k_ro = jax.random.split(key, 4)

    embeddings = jax.random.normal(k_x, (b * ch, embedding_dim), jnp.float32)

    # GCNConv parameters (deterministic synthetic init; PyG stores weight as (out,in)
    # applied as x @ W.T — we store the equivalent (in,out) directly).
    conv_weights = [
        jax.random.normal(k_w, (embedding_dim, hidden_dim), jnp.float32) * 0.05
        for _ in range(num_layers)
    ]
    conv_biases = [
        jax.random.normal(k_b, (hidden_dim,), jnp.float32) * 0.05
        for _ in range(num_layers)
    ]
    # Readout linear params exist in __init__ but forward() never uses them.
    # TODO(synk): rout() (the readout Linear) is not part of forward(); not implemented here.
    readout_w = jax.random.normal(k_ro, (hidden_dim, embedding_dim), jnp.float32) * 0.05
    readout_b = jnp.zeros((embedding_dim,), jnp.float32)

    out = mpnn_conv_forward(embeddings, b, ch, conv_weights, conv_biases)
    out = jax.block_until_ready(out)

    ref = _reference_forward(embeddings, b, ch, conv_weights, conv_biases)
    assert out.shape == (b * ch, hidden_dim)
    assert jnp.allclose(out, ref, atol=1e-4, rtol=1e-4)

    print("KERNEL_OK")
</pallas_src>

<mosaic_0001>
module attributes {stable_mosaic.version = 11 : i64} {
  func.func @_fused_gcn_kernel(%arg0: i32, %arg1: memref<2x8x128xf32, #tpu.memory_space<vmem>>, %arg2: memref<1x128x128xf32, #tpu.memory_space<vmem>>, %arg3: memref<1x1x128xf32, #tpu.memory_space<vmem>>, %arg4: memref<2x8x128xf32, #tpu.memory_space<vmem>>) attributes {dimension_semantics = [#tpu.dimension_semantics<parallel>], iteration_bounds = array<i64: 1>, scalar_prefetch = 0 : i64, scratch_operands = 0 : i64, tpu.core_type = #tpu.core_type<tc>, window_params = [{transform_indices = @transform_0, window_bounds = array<i64: 2, 8, 128>}, {pipeline_mode = #tpu.pipeline_mode<synchronous>, transform_indices = @transform_1, window_bounds = array<i64: 1, 128, 128>}, {pipeline_mode = #tpu.pipeline_mode<synchronous>, transform_indices = @transform_2, window_bounds = array<i64: 1, 1, 128>}, {transform_indices = @transform_3, window_bounds = array<i64: 2, 8, 128>}]} {
    %c0 = arith.constant 0 : index
    %c0_0 = arith.constant 0 : index
    %c0_1 = arith.constant 0 : index
    %0 = vector.load %arg1[%c0, %c0_0, %c0_1] : memref<2x8x128xf32, #tpu.memory_space<vmem>>, vector<2x8x128xf32>
    %cst = arith.constant dense<0.000000e+00> : vector<2x128xf32>
    %1 = vector.multi_reduction <add>, %0, %cst [1] : vector<2x8x128xf32> to vector<2x128xf32>
    %cst_2 = arith.constant 1.250000e-01 : f32
    %2 = vector.broadcast %cst_2 : f32 to vector<2x128xf32>
    %3 = arith.mulf %1, %2 : vector<2x128xf32>
    %c0_3 = arith.constant 0 : index
    %c0_4 = arith.constant 0 : index
    %c0_5 = arith.constant 0 : index
    %4 = vector.load %arg2[%c0_3, %c0_4, %c0_5] : memref<1x128x128xf32, #tpu.memory_space<vmem>>, vector<1x128x128xf32>
    %5 = vector.shape_cast %4 : vector<1x128x128xf32> to vector<128x128xf32>
    %cst_6 = arith.constant dense<0.000000e+00> : vector<2x128xf32>
    %6 = tpu.matmul %3, %5, %cst_6 {dimension_numbers = #tpu.dot_dimension_numbers<[1], [0], [0], [1], [0, 0, 1, 1], [], []>} : vector<2x128xf32>, vector<128x128xf32>, vector<2x128xf32> -> vector<2x128xf32>
    %c0_7 = arith.constant 0 : index
    %c0_8 = arith.constant 0 : index
    %c0_9 = arith.constant 0 : index
    %7 = vector.load %arg3[%c0_7, %c0_8, %c0_9] : memref<1x1x128xf32, #tpu.memory_space<vmem>>, vector<1x1x128xf32>
    %8 = vector.shape_cast %7 : vector<1x1x128xf32> to vector<1x128xf32>
    %9 = vector.broadcast %8 : vector<1x128xf32> to vector<2x128xf32>
    %10 = arith.addf %6, %9 : vector<2x128xf32>
    %cst_10 = arith.constant 0.000000e+00 : f32
    %11 = vector.broadcast %cst_10 : f32 to vector<2x128xf32>
    %12 = arith.cmpf ogt, %10, %11 : vector<2x128xf32>
    %cst_11 = arith.constant 0.00999999977 : f32
    %13 = vector.broadcast %cst_11 : f32 to vector<2x128xf32>
    %14 = arith.mulf %13, %10 : vector<2x128xf32>
    %15 = arith.select %12, %10, %14 : vector<2x128xi1>, vector<2x128xf32>
    %16 = vector.shape_cast %15 : vector<2x128xf32> to vector<2x1x128xf32>
    %17 = vector.shape_cast %16 : vector<2x1x128xf32> to vector<2x1x128xf32>
    %18 = vector.broadcast %17 : vector<2x1x128xf32> to vector<2x8x128xf32>
    %c0_12 = arith.constant 0 : index
    %c0_13 = arith.constant 0 : index
    %c0_14 = arith.constant 0 : index
    %19 = vector.load %arg4[%c0_12, %c0_13, %c0_14] : memref<2x8x128xf32, #tpu.memory_space<vmem>>, vector<2x8x128xf32>
    tpu.vector_store %arg4[%c0_12, %c0_13, %c0_14], %18 {strides = array<i32>} : memref<2x8x128xf32, #tpu.memory_space<vmem>>, vector<2x8x128xf32>,
    return
  }
  func.func @transform_0(%arg0: i32) -> (i32, i32, i32) {
    %c0_i32 = arith.constant 0 : i32
    %c0_i32_0 = arith.constant 0 : i32
    %c0_i32_1 = arith.constant 0 : i32
    return %arg0, %c0_i32, %c0_i32_0 : i32, i32, i32
  }
  func.func @transform_1(%arg0: i32) -> (i32, i32, i32) {
    %c0_i32 = arith.constant 0 : i32
    %c0_i32_0 = arith.constant 0 : i32
    %c0_i32_1 = arith.constant 0 : i32
    %c0_i32_2 = arith.constant 0 : i32
    return %c0_i32, %c0_i32_0, %c0_i32_1 : i32, i32, i32
  }
  func.func @transform_2(%arg0: i32) -> (i32, i32, i32) {
    %c0_i32 = arith.constant 0 : i32
    %c0_i32_0 = arith.constant 0 : i32
    %c0_i32_1 = arith.constant 0 : i32
    %c0_i32_2 = arith.constant 0 : i32
    return %c0_i32, %c0_i32_0, %c0_i32_1 : i32, i32, i32
  }
  func.func @transform_3(%arg0: i32) -> (i32, i32, i32) {
    %c0_i32 = arith.constant 0 : i32
    %c0_i32_0 = arith.constant 0 : i32
    %c0_i32_1 = arith.constant 0 : i32
    return %arg0, %c0_i32, %c0_i32_0 : i32, i32, i32
  }
}

</mosaic_0001>

<llo_original>
// kernel: tpu_custom_call.1
$region0: #{tpu_custom_call.1}
  #allocation0 [shape = 'u32[]', space=smem, size = 0x4, offset = 0x4, fixed_abs, tag = 'smem constant byte address 0x4 - core index']
  #allocation1 [shape = 'u32[144,128]{1,0:T(1,128)}', space=vmem, size = 0x12000, scoped, tag = 'internal scratch']
  %s0 = inlined_call_operand.hbm [shape: f32[2,8,128], index: 0, kind: input, shape index: {}]
  %s1 = inlined_call_operand.hbm [shape: f32[1,128,128], index: 1, kind: input, shape index: {}]
  %s2 = inlined_call_operand.vmem [shape: f32[1,1,128], index: 2, kind: input, shape index: {}]
  %s3 = inlined_call_operand.hbm [shape: f32[2,8,128], index: 3, kind: output, shape index: {}]
  %s4 = sld [smem:[#allocation0]]
  $region30: #{tpu_custom_call.1} parent=0
    _
  %s6 = ssub.s32 1, %s4
  %s7 = scalar_select 0, %s6, %s4
  $region1: #{tpu_custom_call.1} parent=0
    #allocation2 [shape = 'u8[8192]{0}', space=vmem, size = 0x2000, scoped, tag = 'input window, operand 0, single buffered']
    #allocation3 [shape = 's32[1]{0}', space=sflag, size = 0x4, scoped, tag = 'scoped memory for tpu_custom_call.1']
    #allocation4 [shape = 's32[1]{0}', space=sflag, size = 0x4, scoped, tag = 'scoped memory for tpu_custom_call.1']
    #allocation5 [shape = 'u8[65536]{0}', space=vmem, size = 0x10000, scoped, tag = 'input window, operand 1, single buffered']
    #allocation6 [shape = 's32[1]{0}', space=sflag, size = 0x4, scoped, tag = 'scoped memory for tpu_custom_call.1']
    #allocation7 [shape = 'u8[8192]{0}', space=vmem, size = 0x2000, scoped, tag = 'output window, operand 0, single buffered']
    %8 = vsyncpa [#allocation3], 0
    %9 = vsyncpa [#allocation6], 0
    %10 = vsyncpa [#allocation4], 0
    // Predicated region
    $region2: #{tpu_custom_call.1} parent=1 // pred_check
      _
    $region3: #{tpu_custom_call.1} parent=1 // pred_check_branch
      %12 = sbr.rel (0) target = $region5
    $region4: #{tpu_custom_call.1} parent=1 // pred_region
      %s14 = ssub.s32 256, 256
      %15 = vsyncadd [#allocation3], %s14
      %s16 = sshll.u32 [#allocation2], 4
      %s17 = int_to_ptr.vmem [resolvable:$true] %s16
      %22 = dma.hbm_to_vmem [thread:$0]  %s0, 256, %s17, [#allocation3], 128, 128, 8
    $region5: #{tpu_custom_call.1} parent=1 // pred_fallthru
      _
    // Predicated region
    $region6: #{tpu_custom_call.1} parent=1 // pred_check
      _
    $region7: #{tpu_custom_call.1} parent=1 // pred_check_branch
      %24 = sbr.rel (0) target = $region9
    $region8: #{tpu_custom_call.1} parent=1 // pred_region
      %s26 = ssub.s32 2048, 2048
      %27 = vsyncadd [#allocation6], %s26
      %s28 = sshll.u32 [#allocation5], 4
      %s29 = int_to_ptr.vmem [resolvable:$true] %s28
      %34 = dma.hbm_to_vmem [thread:$0]  %s1, 2048, %s29, [#allocation6], 128, 128, 8
    $region9: #{tpu_custom_call.1} parent=1 // pred_fallthru
      _
    // Predicated region
    $region10: #{tpu_custom_call.1} parent=1 // pred_check
      _
    $region11: #{tpu_custom_call.1} parent=1 // pred_check_branch
      %36 = sbr.rel (0) target = $region13
    $region12: #{tpu_custom_call.1} parent=1 // pred_region
      _
    $region13: #{tpu_custom_call.1} parent=1 // pred_fallthru
      _
    // Predicated region
    $region14: #{tpu_custom_call.1} parent=1 // pred_check
      _
    $region15: #{tpu_custom_call.1} parent=1 // pred_check_branch
      %38 = sbr.rel (0) target = $region17
    $region16: #{tpu_custom_call.1} parent=1 // pred_region
      %39 = dma.done [#allocation3], 256
    $region17: #{tpu_custom_call.1} parent=1 // pred_fallthru
      _
    // Predicated region
    $region18: #{tpu_custom_call.1} parent=1 // pred_check
      _
    $region19: #{tpu_custom_call.1} parent=1 // pred_check_branch
      %41 = sbr.rel (0) target = $region21
    $region20: #{tpu_custom_call.1} parent=1 // pred_region
      %42 = dma.done [#allocation6], 2048
    $region21: #{tpu_custom_call.1} parent=1 // pred_fallthru
      _
    %v43 = vld [vmem:[#allocation2] sm:$0xff]
    %v44 = vld [vmem:[#allocation2 + $0x8] sm:$0xff]
    %v45 = vrot.slane %v43, 4
    %v46 = vadd.f32 %v43, %v45
    %v47 = vrot.slane %v46, 2
    %v48 = vadd.f32 %v46, %v47
    %v49 = vrot.slane %v48, 1
    %v50 = vadd.f32 %v48, %v49
    %v51 = vrot.slane %v44, 4
    %v52 = vadd.f32 %v44, %v51
    %v53 = vrot.slane %v52, 2
    %v54 = vadd.f32 %v52, %v53
    %v55 = vrot.slane %v54, 1
    %v56 = vadd.f32 %v54, %v55
    %v57 = vmul.f32 %v50, 0.125
    %v58 = vmul.f32 %v56, 0.125
    %v59 = vld [vmem:[#allocation5] sm:$0xff]
    %v60 = vld [vmem:[#allocation5 + $0x8] sm:$0xff]
    %v61 = vld [vmem:[#allocation5 + $0x10] sm:$0xff]
    %v62 = vld [vmem:[#allocation5 + $0x18] sm:$0xff]
    %v63 = vld [vmem:[#allocation5 + $0x20] sm:$0xff]
    %v64 = vld [vmem:[#allocation5 + $0x28] sm:$0xff]
    %v65 = vld [vmem:[#allocation5 + $0x30] sm:$0xff]
    %v66 = vld [vmem:[#allocation5 + $0x38] sm:$0xff]
    %v67 = vld [vmem:[#allocation5 + $0x40] sm:$0xff]
    %v68 = vld [vmem:[#allocation5 + $0x48] sm:$0xff]
    %v69 = vld [vmem:[#allocation5 + $0x50] sm:$0xff]
    %v70 = vld [vmem:[#allocation5 + $0x58] sm:$0xff]
    %v71 = vld [vmem:[#allocation5 + $0x60] sm:$0xff]
    %v72 = vld [vmem:[#allocation5 + $0x68] sm:$0xff]
    %v73 = vld [vmem:[#allocation5 + $0x70] sm:$0xff]
    %v74 = vld [vmem:[#allocation5 + $0x78] sm:$0xff]
    %v75 = vld [vmem:[%s2] sm:$0x1]
    %v77 = vlaneseq
    %v78 = vshrl.u32 %v77, 7
    %v79 = vsub.s32 0, %v78
    %v80 = vrot.slane %v75, %v79
    %vm84 = vcmask 1041409
    %v85 = vsel %vm84, %v58, %v57
    %87 = vmatprep.subr.mxu0 0.0
    %88 = vmatpush1.msra.mxu0 %v59
    %89 = vmatprep.subr.mxu0 0.0
    %90 = vmatpush1.msra.mxu0 %v60
    %91 = vmatprep.subr.mxu0 0.0
    %92 = vmatpush1.msra.mxu0 %v61
    %93 = vmatprep.subr.mxu0 0.0
    %94 = vmatpush1.msra.mxu0 %v62
    %95 = vmatprep.subr.mxu0 0.0
    %96 = vmatpush1.msra.mxu0 %v63
    %97 = vmatprep.subr.mxu0 0.0
    %98 = vmatpush1.msra.mxu0 %v64
    %99 = vmatprep.subr.mxu0 0.0
    %100 = vmatpush1.msra.mxu0 %v65
    %101 = vmatprep.subr.mxu0 0.0
    %102 = vmatpush1.msra.mxu0 %v66
    %103 = vmatprep.subr.mxu0 0.0
    %104 = vmatpush1.msra.mxu0 %v67
    %105 = vmatprep.subr.mxu0 0.0
    %106 = vmatpush1.msra.mxu0 %v68
    %107 = vmatprep.subr.mxu0 0.0
    %108 = vmatpush1.msra.mxu0 %v69
    %109 = vmatprep.subr.mxu0 0.0
    %110 = vmatpush1.msra.mxu0 %v70
    %111 = vmatprep.subr.mxu0 0.0
    %112 = vmatpush1.msra.mxu0 %v71
    %113 = vmatprep.subr.mxu0 0.0
    %114 = vmatpush1.msra.mxu0 %v72
    %115 = vmatprep.subr.mxu0 0.0
    %116 = vmatpush1.msra.mxu0 %v73
    %117 = vmatprep.subr.mxu0 0.0
    %118 = vmatpush1.msra.mxu0 %v74
    %119 = vmatprep.subr.mxu0 0.0
    %120 = vmatpush1.msra.mxu0 0.0
    %121 = vmatprep.subr.mxu0 0.0
    %122 = vmatpush1.msra.mxu0 0.0
    %123 = vmatprep.subr.mxu0 0.0
    %124 = vmatpush1.msra.mxu0 0.0
    %125 = vmatprep.subr.mxu0 0.0
    %126 = vmatpush1.msra.mxu0 0.0
    %127 = vmatprep.subr.mxu0 0.0
    %128 = vmatpush1.msra.mxu0 0.0
    %129 = vmatprep.subr.mxu0 0.0
    %130 = vmatpush1.msra.mxu0 0.0
    %131 = vmatprep.subr.mxu0 0.0
    %132 = vmatpush1.msra.mxu0 0.0
    %133 = vmatprep.subr.mxu0 0.0
    %134 = vmatpush1.msra.mxu0 0.0
    %135 = vmatprep.subr.mxu0 0.0
    %136 = vmatpush1.msra.mxu0 0.0
    %137 = vmatprep.subr.mxu0 0.0
    %138 = vmatpush1.msra.mxu0 0.0
    %139 = vmatprep.subr.mxu0 0.0
    %140 = vmatpush1.msra.mxu0 0.0
    %141 = vmatprep.subr.mxu0 0.0
    %142 = vmatpush1.msra.mxu0 0.0
    %143 = vmatprep.subr.mxu0 0.0
    %144 = vmatpush1.msra.mxu0 0.0
    %145 = vmatprep.subr.mxu0 0.0
    %146 = vmatpush1.msra.mxu0 0.0
    %147 = vmatprep.subr.mxu0 0.0
    %148 = vmatpush1.msra.mxu0 0.0
    %149 = vmatprep.subr.mxu0 0.0
    %150 = vmatpush1.msra.mxu0 0.0
    %151 = vmatprep.mubr.f32.mxu0 0.0
    %152 = vmatmul.mubr.f32.gmra.mrb[0].mxu0 %v85
    %v153 = vpop.f32.mrb[0].mxu0
    %v154 = vadd.f32 %v80, %v153
    %v155 = vpop.f32.mrb[0].mxu0
    %156 = vdwg.mxu0
    %vm157 = vcmp.gt.f32.partialorder %v154, 0.0
    %v158 = vmul.f32 %v154, 0.01
    %v159 = vsel %vm157, %v154, %v158
    %v162 = vunpack.c.l.s4 1966171168
    %v163 = vunpack.c.0.s8 %v162
    %v164 = vlaneseq
    %v165 = vshrl.u32 %v164, 7
    %v166 = vsub.s32 %v163, %v165
    %v167 = vrot.slane %v159, %v166
    %v168 = vcombine.high %v167, %v167
    %v170 = vunpack.c.l.s4 1966171168
    %v171 = vunpack.c.0.s8 %v170
    %v172 = vlaneseq
    %v173 = vshrl.u32 %v172, 7
    %v174 = vsub.s32 %v171, %v173
    %v175 = vrot.slane %v167, %v174
    %v177 = vunpack.c.l.s4 1966171168
    %v178 = vunpack.c.0.s8 %v177
    %v179 = vlaneseq
    %v180 = vshrl.u32 %v179, 7
    %v181 = vsub.s32 %v178, %v180
    %v182 = vrot.slane %v168, %v181
    %v183 = vlaneseq
    %v184 = vshrl.u32 %v183, 7
    %v185 = vsub.s32 0, %v184
    %v186 = vrot.slane %v175, %v185
    %v187 = vlaneseq
    %v188 = vshrl.u32 %v187, 7
    %v189 = vsub.s32 0, %v188
    %v190 = vrot.slane %v182, %v189
    %193 = vst [vmem:[#allocation7] sm:$0xff] %v186
    %194 = vst [vmem:[#allocation7 + $0x8] sm:$0xff] %v190
    // Predicated region
    $region22: #{tpu_custom_call.1} parent=1 // pred_check
      _
    $region23: #{tpu_custom_call.1} parent=1 // pred_check_branch
      %196 = sbr.rel (0) target = $region25
    $region24: #{tpu_custom_call.1} parent=1 // pred_region
      %s198 = ssub.s32 256, 256
      %199 = vsyncadd [#allocation4], %s198
      %s200 = sshll.u32 [#allocation7], 4
      %s201 = int_to_ptr.vmem [resolvable:$true] %s200
      %206 = dma.vmem_to_hbm [thread:$0]  %s201, 256, %s3, [#allocation4], 128, 128, 8
    $region25: #{tpu_custom_call.1} parent=1 // pred_fallthru
      _
    // Predicated region
    $region26: #{tpu_custom_call.1} parent=1 // pred_check
      _
    $region27: #{tpu_custom_call.1} parent=1 // pred_check_branch
      %208 = sbr.rel (0) target = $region29
    $region28: #{tpu_custom_call.1} parent=1 // pred_region
      %209 = dma.done [#allocation4], 256
    $region29: #{tpu_custom_call.1} parent=1 // pred_fallthru
      _
    %210 = vsyncpa [#allocation3], 1
    %211 = vsyncpa [#allocation6], 1
    %212 = vsyncpa [#allocation4], 1

</llo_original>
